<compile_context>
chip_gen: v7x
topology: tpu7x:2x2x1
jax: 0.10.0
libtpu: 0.0.40
codegen_flags: <defaults>
</compile_context>

<pallas_src>
import jax
import jax.numpy as jnp
from jax.experimental import pallas as pl
from jax.experimental.pallas import tpu as pltpu


def _rmsnorm_kernel(x_ref, scale_ref, o_ref):
    # Mirrors torch semantics exactly:
    #   x32  = x.float()
    #   rrms = rsqrt(mean(x32**2, -1, keepdim) + 1e-6)
    #   out  = (x32 * rrms).to(x.dtype) * scale     (scale already in the output dtype)
    x32 = x_ref[...].astype(jnp.float32)
    ms = jnp.mean(x32 * x32, axis=-1, keepdims=True)
    rrms = jax.lax.rsqrt(ms + 1e-6)                     # EUP slot; hidden under HBM traffic
    normed = (x32 * rrms).astype(x_ref.dtype)           # round back to input dtype (torch .to)
    o_ref[...] = normed.astype(o_ref.dtype) * scale_ref[...]


# Fallback budgets (v7x-safe: 64 MiB physical per TC).
_SMALL_TILE_BUDGET = 24 * 1024 * 1024
_SMALL_VMEM_LIMIT = 48 * 1024 * 1024
# Budgets for 128 MiB parts (v5e / v6e).
_BIG_TILE_BUDGET = 48 * 1024 * 1024
_BIG_VMEM_LIMIT = 96 * 1024 * 1024


def _vmem_budgets():
    """(tile_budget_bytes, vmem_limit_bytes), generation-aware when queryable."""
    try:
        cap = int(pltpu.get_tpu_info().vmem_capacity_bytes)
    except Exception:
        cap = 64 * 1024 * 1024  # conservative (v7x per-TC)
    if cap >= 100 * 1024 * 1024:       # 128 MiB parts: v5e / v6e
        return _BIG_TILE_BUDGET, _BIG_VMEM_LIMIT
    return _SMALL_TILE_BUDGET, _SMALL_VMEM_LIMIT


def _sublane_multiple(dtype) -> int:
    # Rows per vreg sublane group: f32 -> 8, bf16/f16 -> 16, int8/fp8 -> 32.
    return 32 // jnp.dtype(dtype).itemsize


def _pick_block_rows(rows: int, dim: int, x_dtype, out_dtype, tile_budget: int) -> int:
    mult = max(_sublane_multiple(x_dtype), _sublane_multiple(out_dtype))
    x_bytes = jnp.dtype(x_dtype).itemsize
    o_bytes = jnp.dtype(out_dtype).itemsize
    # Double-buffered input + output tiles, plus one single-buffered fp32 intermediate
    # of the tile when x is not already fp32 (the kernel materializes x32 for the
    # mean pass and reuses it for the normalize pass).
    per_row_bytes = dim * (2 * x_bytes + 2 * o_bytes)
    if jnp.dtype(x_dtype) != jnp.dtype(jnp.float32):
        per_row_bytes += dim * 4
    block_rows = max(1, tile_budget // per_row_bytes)
    # Don't tile larger than the (packing-rounded) row count.
    rows_rounded = ((rows + mult - 1) // mult) * mult
    block_rows = min(block_rows, rows_rounded)
    # Round down to the packing multiple, at least one full sublane group.
    block_rows = max(mult, (block_rows // mult) * mult)
    return block_rows


# Cached row-axis semantics: None = not probed yet, else the tuple to pass.
_ROW_SEMANTICS = None


def _candidate_semantics():
    cands = []
    if hasattr(pltpu, "CORE_PARALLEL"):
        # On v7x this actually splits the row grid across both TensorCores
        # (plain "parallel" does not change core assignment).
        cands.append((pltpu.CORE_PARALLEL,))
    cands.append(("parallel",))
    return cands


def rmsnorm(x, scale, *, block_rows=None, keep_input_dtype=False):
    """x: (..., dim), scale: (dim,). Same shape out.

    Output dtype follows torch promotion of `(x * rrms).to(x.dtype) * scale` unless
    keep_input_dtype=True, which casts scale to x.dtype first (halves writeback bytes
    for bf16 x + fp32 scale; opt-in because it deviates from strict torch promotion).
    """
    global _ROW_SEMANTICS
    dim = x.shape[-1]
    assert scale.shape == (dim,)
    lead = x.shape[:-1]
    rows = 1
    for s in lead:
        rows *= s

    if keep_input_dtype:
        scale = scale.astype(x.dtype)
    out_dtype = jnp.result_type(x.dtype, scale.dtype)    # torch promotion of (x_dtype * scale)

    if rows == 0:
        return jnp.zeros((*lead, dim), dtype=out_dtype)

    x2d = x.reshape(rows, dim)
    # Pre-cast scale to the output dtype so the kernel does no per-step cast.
    scale2d = scale.reshape(1, dim).astype(out_dtype)

    tile_budget, vmem_limit = _vmem_budgets()
    if block_rows is None:
        block_rows = _pick_block_rows(rows, dim, x.dtype, out_dtype, tile_budget)

    grid = (pl.cdiv(rows, block_rows),)  # partial last block masked by Pallas; per-row
                                         # reduction => garbage rows can't contaminate.

    bytes_accessed = (rows * dim * jnp.dtype(x.dtype).itemsize
                      + dim * jnp.dtype(out_dtype).itemsize
                      + rows * dim * jnp.dtype(out_dtype).itemsize)
    cost = pl.CostEstimate(flops=4 * rows * dim,
                           transcendentals=rows,
                           bytes_accessed=bytes_accessed)

    def build(row_sem):
        return pl.pallas_call(
            _rmsnorm_kernel,
            out_shape=jax.ShapeDtypeStruct((rows, dim), out_dtype),
            grid_spec=pltpu.PrefetchScalarGridSpec(
                num_scalar_prefetch=0,
                grid=grid,
                in_specs=[
                    pl.BlockSpec((block_rows, dim), lambda i: (i, 0)),
                    pl.BlockSpec((1, dim), lambda i: (0, 0)),
                ],
                out_specs=pl.BlockSpec((block_rows, dim), lambda i: (i, 0)),
            ),
            compiler_params=pltpu.CompilerParams(
                dimension_semantics=row_sem,
                vmem_limit_bytes=vmem_limit,
            ),
            cost_estimate=cost,
        )

    if _ROW_SEMANTICS is not None:
        out = build(_ROW_SEMANTICS)(x2d, scale2d)
    else:
        out = None
        last_err = None
        for sem in _candidate_semantics():
            try:
                out = build(sem)(x2d, scale2d)
                _ROW_SEMANTICS = sem
                break
            except Exception as e:          # older runtime / unsupported semantics
                last_err = e
                continue
        if out is None:
            raise last_err

    return out.reshape(*lead, dim)


if __name__ == "__main__":
    # Small shapes consistent with the module: batch=2, seq=8, hidden=32.
    B, S, D = 2, 8, 32
    key = jax.random.PRNGKey(0)
    kx, ks = jax.random.split(key)
    x = jax.random.normal(kx, (B, S, D), dtype=jnp.float32)
    # Deterministic parameter init: nn.Parameter(torch.ones(dim)) perturbed deterministically.
    scale = jnp.ones((D,), dtype=jnp.float32) + 0.01 * jax.random.normal(ks, (D,), dtype=jnp.float32)

    y = rmsnorm(x, scale)
    y = jax.block_until_ready(y)

    # Pure-JAX reference (exact torch semantics).
    x32 = x.astype(jnp.float32)
    rrms = jax.lax.rsqrt(jnp.mean(x32 * x32, axis=-1, keepdims=True) + 1e-6)
    ref = (x32 * rrms).astype(x.dtype).astype(jnp.float32) * scale
    assert y.shape == ref.shape and y.dtype == ref.dtype
    assert jnp.allclose(y, ref, atol=1e-5, rtol=1e-5), "mismatch vs reference"

    print("KERNEL_OK")
</pallas_src>

<mosaic_0001>
module attributes {stable_mosaic.version = 11 : i64} {
  func.func @_rmsnorm_kernel(%arg0: i32, %arg1: memref<16x32xf32, #tpu.memory_space<vmem>>, %arg2: memref<1x32xf32, #tpu.memory_space<vmem>>, %arg3: memref<16x32xf32, #tpu.memory_space<vmem>>) attributes {dimension_semantics = [#tpu.dimension_semantics<core_parallel>], iteration_bounds = array<i64: 1>, scalar_prefetch = 0 : i64, scratch_operands = 0 : i64, tpu.core_type = #tpu.core_type<tc>, window_params = [{transform_indices = @transform_0, window_bounds = array<i64: 16, 32>}, {pipeline_mode = #tpu.pipeline_mode<synchronous>, transform_indices = @transform_1, window_bounds = array<i64: 1, 32>}, {transform_indices = @transform_2, window_bounds = array<i64: 16, 32>}]} {
    %c0 = arith.constant 0 : index
    %c0_0 = arith.constant 0 : index
    %0 = vector.load %arg1[%c0, %c0_0] : memref<16x32xf32, #tpu.memory_space<vmem>>, vector<16x32xf32>
    %1 = arith.mulf %0, %0 : vector<16x32xf32>
    %cst = arith.constant dense<0.000000e+00> : vector<16xf32>
    %2 = vector.multi_reduction <add>, %1, %cst [1] : vector<16x32xf32> to vector<16xf32>
    %3 = vector.shape_cast %2 : vector<16xf32> to vector<16x1xf32>
    %cst_1 = arith.constant 3.200000e+01 : f32
    %4 = vector.broadcast %cst_1 : f32 to vector<16x1xf32>
    %5 = arith.divf %3, %4 : vector<16x1xf32>
    %cst_2 = arith.constant 9.99999997E-7 : f32
    %6 = vector.broadcast %cst_2 : f32 to vector<16x1xf32>
    %7 = arith.addf %5, %6 : vector<16x1xf32>
    %8 = math.rsqrt %7 : vector<16x1xf32>
    %9 = vector.broadcast %8 : vector<16x1xf32> to vector<16x32xf32>
    %10 = arith.mulf %0, %9 : vector<16x32xf32>
    %c0_3 = arith.constant 0 : index
    %c0_4 = arith.constant 0 : index
    %11 = vector.load %arg2[%c0_3, %c0_4] : memref<1x32xf32, #tpu.memory_space<vmem>>, vector<1x32xf32>
    %12 = vector.broadcast %11 : vector<1x32xf32> to vector<16x32xf32>
    %13 = arith.mulf %10, %12 : vector<16x32xf32>
    %c0_5 = arith.constant 0 : index
    %c0_6 = arith.constant 0 : index
    %14 = vector.load %arg3[%c0_5, %c0_6] : memref<16x32xf32, #tpu.memory_space<vmem>>, vector<16x32xf32>
    tpu.vector_store %arg3[%c0_5, %c0_6], %13 {strides = array<i32>} : memref<16x32xf32, #tpu.memory_space<vmem>>, vector<16x32xf32>,
    return
  }
  func.func @transform_0(%arg0: i32) -> (i32, i32) {
    %c0_i32 = arith.constant 0 : i32
    %c0_i32_0 = arith.constant 0 : i32
    return %arg0, %c0_i32 : i32, i32
  }
  func.func @transform_1(%arg0: i32) -> (i32, i32) {
    %c0_i32 = arith.constant 0 : i32
    %c0_i32_0 = arith.constant 0 : i32
    %c0_i32_1 = arith.constant 0 : i32
    return %c0_i32, %c0_i32_0 : i32, i32
  }
  func.func @transform_2(%arg0: i32) -> (i32, i32) {
    %c0_i32 = arith.constant 0 : i32
    %c0_i32_0 = arith.constant 0 : i32
    return %arg0, %c0_i32 : i32, i32
  }
}

module attributes {stable_mosaic.version = 11 : i64} {
  func.func @_rmsnorm_kernel(%arg0: i32, %arg1: memref<16x32xf32, #tpu.memory_space<vmem>>, %arg2: memref<1x32xf32, #tpu.memory_space<vmem>>, %arg3: memref<16x32xf32, #tpu.memory_space<vmem>>) attributes {dimension_semantics = [#tpu.dimension_semantics<parallel>], iteration_bounds = array<i64: 1>, scalar_prefetch = 0 : i64, scratch_operands = 0 : i64, tpu.core_type = #tpu.core_type<tc>, window_params = [{transform_indices = @transform_0, window_bounds = array<i64: 16, 32>}, {pipeline_mode = #tpu.pipeline_mode<synchronous>, transform_indices = @transform_1, window_bounds = array<i64: 1, 32>}, {transform_indices = @transform_2, window_bounds = array<i64: 16, 32>}]} {
    %c0 = arith.constant 0 : index
    %c0_0 = arith.constant 0 : index
    %0 = vector.load %arg1[%c0, %c0_0] : memref<16x32xf32, #tpu.memory_space<vmem>>, vector<16x32xf32>
    %1 = arith.mulf %0, %0 : vector<16x32xf32>
    %cst = arith.constant dense<0.000000e+00> : vector<16xf32>
    %2 = vector.multi_reduction <add>, %1, %cst [1] : vector<16x32xf32> to vector<16xf32>
    %3 = vector.shape_cast %2 : vector<16xf32> to vector<16x1xf32>
    %cst_1 = arith.constant 3.200000e+01 : f32
    %4 = vector.broadcast %cst_1 : f32 to vector<16x1xf32>
    %5 = arith.divf %3, %4 : vector<16x1xf32>
    %cst_2 = arith.constant 9.99999997E-7 : f32
    %6 = vector.broadcast %cst_2 : f32 to vector<16x1xf32>
    %7 = arith.addf %5, %6 : vector<16x1xf32>
    %8 = math.rsqrt %7 : vector<16x1xf32>
    %9 = vector.broadcast %8 : vector<16x1xf32> to vector<16x32xf32>
    %10 = arith.mulf %0, %9 : vector<16x32xf32>
    %c0_3 = arith.constant 0 : index
    %c0_4 = arith.constant 0 : index
    %11 = vector.load %arg2[%c0_3, %c0_4] : memref<1x32xf32, #tpu.memory_space<vmem>>, vector<1x32xf32>
    %12 = vector.broadcast %11 : vector<1x32xf32> to vector<16x32xf32>
    %13 = arith.mulf %10, %12 : vector<16x32xf32>
    %c0_5 = arith.constant 0 : index
    %c0_6 = arith.constant 0 : index
    %14 = vector.load %arg3[%c0_5, %c0_6] : memref<16x32xf32, #tpu.memory_space<vmem>>, vector<16x32xf32>
    tpu.vector_store %arg3[%c0_5, %c0_6], %13 {strides = array<i32>} : memref<16x32xf32, #tpu.memory_space<vmem>>, vector<16x32xf32>,
    return
  }
  func.func @transform_0(%arg0: i32) -> (i32, i32) {
    %c0_i32 = arith.constant 0 : i32
    %c0_i32_0 = arith.constant 0 : i32
    return %arg0, %c0_i32 : i32, i32
  }
  func.func @transform_1(%arg0: i32) -> (i32, i32) {
    %c0_i32 = arith.constant 0 : i32
    %c0_i32_0 = arith.constant 0 : i32
    %c0_i32_1 = arith.constant 0 : i32
    return %c0_i32, %c0_i32_0 : i32, i32
  }
  func.func @transform_2(%arg0: i32) -> (i32, i32) {
    %c0_i32 = arith.constant 0 : i32
    %c0_i32_0 = arith.constant 0 : i32
    return %arg0, %c0_i32 : i32, i32
  }
}

</mosaic_0001>

<llo_original>
// kernel: tpu_custom_call.1
$region0: #{tpu_custom_call.1}
  #allocation0 [shape = 'u32[]', space=smem, size = 0x4, offset = 0x4, fixed_abs, tag = 'smem constant byte address 0x4 - core index']
  #allocation1 [shape = 'u32[144,128]{1,0:T(1,128)}', space=vmem, size = 0x12000, scoped, tag = 'internal scratch']
  %s0 = inlined_call_operand.hbm [shape: f32[16,32], index: 0, kind: input, shape index: {}]
  %s1 = inlined_call_operand.vmem [shape: f32[1,32], index: 1, kind: input, shape index: {}]
  %s2 = inlined_call_operand.hbm [shape: f32[16,32], index: 2, kind: output, shape index: {}]
  %s3 = sld [smem:[#allocation0]]
  $region22: #{tpu_custom_call.1} parent=0
    _
  %s5 = ssub.s32 1, %s3
  %s6 = scalar_select 0, %s5, %s3
  $region1: #{tpu_custom_call.1} parent=0
    #allocation2 [shape = 'u8[8192]{0}', space=vmem, size = 0x2000, scoped, tag = 'input window, operand 0, single buffered']
    #allocation3 [shape = 's32[1]{0}', space=sflag, size = 0x4, scoped, tag = 'scoped memory for tpu_custom_call.1']
    #allocation4 [shape = 's32[1]{0}', space=sflag, size = 0x4, scoped, tag = 'scoped memory for tpu_custom_call.1']
    #allocation5 [shape = 'u8[8192]{0}', space=vmem, size = 0x2000, scoped, tag = 'output window, operand 0, single buffered']
    %7 = vsyncpa [#allocation3], 0
    %8 = vsyncpa [#allocation4], 0
    // Predicated region
    $region2: #{tpu_custom_call.1} parent=1 // pred_check
      _
    $region3: #{tpu_custom_call.1} parent=1 // pred_check_branch
      %10 = sbr.rel (0) target = $region5
    $region4: #{tpu_custom_call.1} parent=1 // pred_region
      %s11 = smul.u32 2, %s6
      %s13 = ssub.s32 256, 256
      %14 = vsyncadd [#allocation3], %s13
      %s15 = smul.addr %s11, 128
      %s16 = scalar_lea.hbm %s0, %s15
      %s17 = sshll.u32 [#allocation2], 4
      %s18 = int_to_ptr.vmem [resolvable:$true] %s17
      %23 = dma.hbm_to_vmem [thread:$0]  %s16, 256, %s18, [#allocation3], 128, 128, 8
    $region5: #{tpu_custom_call.1} parent=1 // pred_fallthru
      _
    // Predicated region
    $region6: #{tpu_custom_call.1} parent=1 // pred_check
      _
    $region7: #{tpu_custom_call.1} parent=1 // pred_check_branch
      %25 = sbr.rel (0) target = $region9
    $region8: #{tpu_custom_call.1} parent=1 // pred_region
      _
    $region9: #{tpu_custom_call.1} parent=1 // pred_fallthru
      _
    // Predicated region
    $region10: #{tpu_custom_call.1} parent=1 // pred_check
      _
    $region11: #{tpu_custom_call.1} parent=1 // pred_check_branch
      %27 = sbr.rel (0) target = $region13
    $region12: #{tpu_custom_call.1} parent=1 // pred_region
      %28 = dma.done [#allocation3], 256
    $region13: #{tpu_custom_call.1} parent=1 // pred_fallthru
      _
    %s29 = smul.u32 2, %s6
    %s30 = smul.u32 2, %s6
    %v31 = vld [vmem:[#allocation2] sm:$0xff]
    %v32 = vld [vmem:[#allocation2 + $0x8] sm:$0xff]
    %v33 = vmul.f32 %v31, %v31
    %v34 = vmul.f32 %v32, %v32
    %vm35 = vcmask 261120
    %v36 = vsel %vm35, %v33, 0.0
    %37 = vadd.xlane.f32.xlu0 %v36
    %v38 = vpop.xlane.xlu0 %37
    %v39 = vsel %vm35, %v34, 0.0
    %40 = vadd.xlane.f32.xlu0 %v39
    %v41 = vpop.xlane.xlu0 %40
    %v42 = vrcp.pop 32.0
    %v43 = vmul.f32 %v38, %v42
    %v44 = vmul.f32 %v41, %v42
    %v45 = vadd.f32 %v43, 1e-06
    %v46 = vadd.f32 %v44, 1e-06
    %v47 = vrsqrt.pop %v45
    %v48 = vrsqrt.pop %v46
    %v49 = vmul.f32 %v31, %v47
    %v50 = vmul.f32 %v32, %v48
    %v51 = vld [vmem:[%s1] sm:$0x1]
    %v53 = vlaneseq
    %v54 = vshrl.u32 %v53, 7
    %v55 = vsub.s32 0, %v54
    %v56 = vrot.slane %v51, %v55
    %v58 = vmul.f32 %v49, %v56
    %v59 = vmul.f32 %v50, %v56
    %60 = vst.msk [vmem:[#allocation5] sm:$0xff] %vm35, %v58
    %61 = vst.msk [vmem:[#allocation5 + $0x8] sm:$0xff] %vm35, %v59
    // Predicated region
    $region14: #{tpu_custom_call.1} parent=1 // pred_check
      _
    $region15: #{tpu_custom_call.1} parent=1 // pred_check_branch
      %63 = sbr.rel (0) target = $region17
    $region16: #{tpu_custom_call.1} parent=1 // pred_region
      %s64 = smul.u32 2, %s6
      %s66 = ssub.s32 256, 256
      %67 = vsyncadd [#allocation4], %s66
      %s68 = smul.addr %s64, 128
      %s69 = scalar_lea.hbm %s2, %s68
      %s70 = sshll.u32 [#allocation5], 4
      %s71 = int_to_ptr.vmem [resolvable:$true] %s70
      %76 = dma.vmem_to_hbm [thread:$0]  %s71, 256, %s69, [#allocation4], 128, 128, 8
    $region17: #{tpu_custom_call.1} parent=1 // pred_fallthru
      _
    // Predicated region
    $region18: #{tpu_custom_call.1} parent=1 // pred_check
      _
    $region19: #{tpu_custom_call.1} parent=1 // pred_check_branch
      %78 = sbr.rel (0) target = $region21
    $region20: #{tpu_custom_call.1} parent=1 // pred_region
      %79 = dma.done [#allocation4], 256
    $region21: #{tpu_custom_call.1} parent=1 // pred_fallthru
      _
    %80 = vsyncpa [#allocation3], 1
    %81 = vsyncpa [#allocation4], 1

// kernel: tpu_custom_call.1
$region0: #{tpu_custom_call.1}
  #allocation0 [shape = 'u32[]', space=smem, size = 0x4, offset = 0x4, fixed_abs, tag = 'smem constant byte address 0x4 - core index']
  #allocation1 [shape = 'u32[144,128]{1,0:T(1,128)}', space=vmem, size = 0x12000, scoped, tag = 'internal scratch']
  %s0 = inlined_call_operand.hbm [shape: f32[16,32], index: 0, kind: input, shape index: {}]
  %s1 = inlined_call_operand.vmem [shape: f32[1,32], index: 1, kind: input, shape index: {}]
  %s2 = inlined_call_operand.hbm [shape: f32[16,32], index: 2, kind: output, shape index: {}]
  %s3 = sld [smem:[#allocation0]]
  $region22: #{tpu_custom_call.1} parent=0
    _
  %s5 = ssub.s32 1, %s3
  %s6 = scalar_select 0, %s5, %s3
  $region1: #{tpu_custom_call.1} parent=0
    #allocation2 [shape = 'u8[8192]{0}', space=vmem, size = 0x2000, scoped, tag = 'input window, operand 0, single buffered']
    #allocation3 [shape = 's32[1]{0}', space=sflag, size = 0x4, scoped, tag = 'scoped memory for tpu_custom_call.1']
    #allocation4 [shape = 's32[1]{0}', space=sflag, size = 0x4, scoped, tag = 'scoped memory for tpu_custom_call.1']
    #allocation5 [shape = 'u8[8192]{0}', space=vmem, size = 0x2000, scoped, tag = 'output window, operand 0, single buffered']
    %7 = vsyncpa [#allocation3], 0
    %8 = vsyncpa [#allocation4], 0
    // Predicated region
    $region2: #{tpu_custom_call.1} parent=1 // pred_check
      _
    $region3: #{tpu_custom_call.1} parent=1 // pred_check_branch
      %10 = sbr.rel (0) target = $region5
    $region4: #{tpu_custom_call.1} parent=1 // pred_region
      %s12 = ssub.s32 256, 256
      %13 = vsyncadd [#allocation3], %s12
      %s14 = sshll.u32 [#allocation2], 4
      %s15 = int_to_ptr.vmem [resolvable:$true] %s14
      %20 = dma.hbm_to_vmem [thread:$0]  %s0, 256, %s15, [#allocation3], 128, 128, 8
    $region5: #{tpu_custom_call.1} parent=1 // pred_fallthru
      _
    // Predicated region
    $region6: #{tpu_custom_call.1} parent=1 // pred_check
      _
    $region7: #{tpu_custom_call.1} parent=1 // pred_check_branch
      %22 = sbr.rel (0) target = $region9
    $region8: #{tpu_custom_call.1} parent=1 // pred_region
      _
    $region9: #{tpu_custom_call.1} parent=1 // pred_fallthru
      _
    // Predicated region
    $region10: #{tpu_custom_call.1} parent=1 // pred_check
      _
    $region11: #{tpu_custom_call.1} parent=1 // pred_check_branch
      %24 = sbr.rel (0) target = $region13
    $region12: #{tpu_custom_call.1} parent=1 // pred_region
      %25 = dma.done [#allocation3], 256
    $region13: #{tpu_custom_call.1} parent=1 // pred_fallthru
      _
    %v26 = vld [vmem:[#allocation2] sm:$0xff]
    %v27 = vld [vmem:[#allocation2 + $0x8] sm:$0xff]
    %v28 = vmul.f32 %v26, %v26
    %v29 = vmul.f32 %v27, %v27
    %vm30 = vcmask 261120
    %v31 = vsel %vm30, %v28, 0.0
    %32 = vadd.xlane.f32.xlu0 %v31
    %v33 = vpop.xlane.xlu0 %32
    %v34 = vsel %vm30, %v29, 0.0
    %35 = vadd.xlane.f32.xlu0 %v34
    %v36 = vpop.xlane.xlu0 %35
    %v37 = vrcp.pop 32.0
    %v38 = vmul.f32 %v33, %v37
    %v39 = vmul.f32 %v36, %v37
    %v40 = vadd.f32 %v38, 1e-06
    %v41 = vadd.f32 %v39, 1e-06
    %v42 = vrsqrt.pop %v40
    %v43 = vrsqrt.pop %v41
    %v44 = vmul.f32 %v26, %v42
    %v45 = vmul.f32 %v27, %v43
    %v46 = vld [vmem:[%s1] sm:$0x1]
    %v48 = vlaneseq
    %v49 = vshrl.u32 %v48, 7
    %v50 = vsub.s32 0, %v49
    %v51 = vrot.slane %v46, %v50
    %v53 = vmul.f32 %v44, %v51
    %v54 = vmul.f32 %v45, %v51
    %55 = vst.msk [vmem:[#allocation5] sm:$0xff] %vm30, %v53
    %56 = vst.msk [vmem:[#allocation5 + $0x8] sm:$0xff] %vm30, %v54
    // Predicated region
    $region14: #{tpu_custom_call.1} parent=1 // pred_check
      _
    $region15: #{tpu_custom_call.1} parent=1 // pred_check_branch
      %58 = sbr.rel (0) target = $region17
    $region16: #{tpu_custom_call.1} parent=1 // pred_region
      %s60 = ssub.s32 256, 256
      %61 = vsyncadd [#allocation4], %s60
      %s62 = sshll.u32 [#allocation5], 4
      %s63 = int_to_ptr.vmem [resolvable:$true] %s62
      %68 = dma.vmem_to_hbm [thread:$0]  %s63, 256, %s2, [#allocation4], 128, 128, 8
    $region17: #{tpu_custom_call.1} parent=1 // pred_fallthru
      _
    // Predicated region
    $region18: #{tpu_custom_call.1} parent=1 // pred_check
      _
    $region19: #{tpu_custom_call.1} parent=1 // pred_check_branch
      %70 = sbr.rel (0) target = $region21
    $region20: #{tpu_custom_call.1} parent=1 // pred_region
      %71 = dma.done [#allocation4], 256
    $region21: #{tpu_custom_call.1} parent=1 // pred_fallthru
      _
    %72 = vsyncpa [#allocation3], 1
    %73 = vsyncpa [#allocation4], 1

</llo_original>
